<compile_context>
chip_gen: v6e
topology: v6e:2x2x1
jax: 0.10.0
libtpu: 0.0.40
codegen_flags: <defaults>
</compile_context>

<pallas_src>
import functools

import jax
import jax.numpy as jnp
from jax.experimental import pallas as pl
from jax.experimental.pallas import tpu as pltpu

IN_FEATURES = 64
OUT_FEATURES = 2


def _linear_kernel(x_ref, w_ref, b_ref, o_ref):
    # x_ref: (TB, 64)   w_ref: (64, 2)   b_ref: (1, 2)   o_ref: (TB, 2)
    acc = jnp.dot(x_ref[...], w_ref[...], preferred_element_type=jnp.float32)
    o_ref[...] = (acc + b_ref[...].astype(jnp.float32)).astype(o_ref.dtype)


def prepare_params(weight, bias):
    """One-time parameter prep (hoist out of the per-call path).

    weight: (2, 64) PyTorch [out, in] layout  -> returns (64, 2) matmul-ready.
    bias:   (2,)                              -> returns (1, 2) for broadcast.
    """
    return weight.T, bias.reshape(1, OUT_FEATURES)


@functools.partial(jax.jit, static_argnames=("block_rows", "cast_inputs_to_bf16"))
def quantum_layer(x, w_t, b2d, *, block_rows=1024, cast_inputs_to_bf16=False):
    """Forward pass of QuantumLayer: x @ W.T + b.

    Args:
      x:   (B, 64) float32 (or bf16)
      w_t: (64, 2) weight, already transposed (see prepare_params)
      b2d: (1, 2)  bias, already reshaped     (see prepare_params)
      block_rows: batch-tile size (rows per grid step).
      cast_inputs_to_bf16: if True, stream x / w_t as bf16 (f32 accumulate).
    Returns:
      (B, 2) array with x's original dtype.
    """
    B = x.shape[0]
    out_dtype = x.dtype

    if cast_inputs_to_bf16:
        x = x.astype(jnp.bfloat16)
        w_t = w_t.astype(jnp.bfloat16)

    # Batch tile: full batch if small, otherwise block_rows (multiple of 8).
    tb = B if B <= block_rows else block_rows
    grid = (pl.cdiv(B, tb),)

    in_bytes = (B * IN_FEATURES * jnp.dtype(x.dtype).itemsize
                + IN_FEATURES * OUT_FEATURES * jnp.dtype(w_t.dtype).itemsize
                + OUT_FEATURES * jnp.dtype(b2d.dtype).itemsize)
    out_bytes = B * OUT_FEATURES * jnp.dtype(out_dtype).itemsize
    cost = pl.CostEstimate(
        flops=2 * B * IN_FEATURES * OUT_FEATURES,
        bytes_accessed=in_bytes + out_bytes,
        transcendentals=0,
    )

    return pl.pallas_call(
        _linear_kernel,
        out_shape=jax.ShapeDtypeStruct((B, OUT_FEATURES), out_dtype),
        grid_spec=pltpu.PrefetchScalarGridSpec(
            num_scalar_prefetch=0,
            grid=grid,
            in_specs=[
                # x: tiled over batch, pipelined across grid steps.
                pl.BlockSpec((tb, IN_FEATURES), lambda i: (i, 0)),
                # weight / bias: constant index_map -> resident in VMEM.
                pl.BlockSpec((IN_FEATURES, OUT_FEATURES), lambda i: (0, 0)),
                pl.BlockSpec((1, OUT_FEATURES), lambda i: (0, 0)),
            ],
            out_specs=pl.BlockSpec((tb, OUT_FEATURES), lambda i: (i, 0)),
        ),
        compiler_params=pltpu.CompilerParams(
            # Batch tiles are independent -> shard across the 2 TCs on v7x.
            dimension_semantics=("parallel",)),
        cost_estimate=cost,
    )(x, w_t, b2d)


def reference(x, weight, bias):
    return x @ weight.T + bias


if __name__ == "__main__":
    key = jax.random.PRNGKey(0)
    kx, kw, kb = jax.random.split(key, 3)

    B = 8
    x = jax.random.normal(kx, (B, IN_FEATURES), dtype=jnp.float32)
    # Deterministic param init (uniform like PyTorch's default bound 1/sqrt(fan_in))
    bound = 1.0 / (IN_FEATURES ** 0.5)
    weight = jax.random.uniform(
        kw, (OUT_FEATURES, IN_FEATURES), minval=-bound, maxval=bound,
        dtype=jnp.float32)
    bias = jax.random.uniform(
        kb, (OUT_FEATURES,), minval=-bound, maxval=bound, dtype=jnp.float32)

    # Parameter prep done once, outside the hot path.
    w_t, b2d = prepare_params(weight, bias)

    out = quantum_layer(x, w_t, b2d)
    out = jax.block_until_ready(out)

    ref = reference(x, weight, bias)
    assert out.shape == (B, OUT_FEATURES), out.shape
    assert jnp.allclose(out, ref, atol=1e-5, rtol=1e-5), (
        f"max err {jnp.max(jnp.abs(out - ref))}")

    # Exercise the tiled multi-step path as well (B > block_rows).
    B2 = 2048
    x2 = jax.random.normal(kx, (B2, IN_FEATURES), dtype=jnp.float32)
    out2 = jax.block_until_ready(
        quantum_layer(x2, w_t, b2d, block_rows=512))
    ref2 = reference(x2, weight, bias)
    assert jnp.allclose(out2, ref2, atol=1e-5, rtol=1e-5), (
        f"max err {jnp.max(jnp.abs(out2 - ref2))}")

    print("KERNEL_OK")
</pallas_src>

<mosaic_0001>
module attributes {stable_mosaic.version = 11 : i64} {
  func.func @_linear_kernel(%arg0: i32, %arg1: memref<8x64xf32, #tpu.memory_space<vmem>>, %arg2: memref<64x2xf32, #tpu.memory_space<vmem>>, %arg3: memref<1x2xf32, #tpu.memory_space<vmem>>, %arg4: memref<8x2xf32, #tpu.memory_space<vmem>>) attributes {dimension_semantics = [#tpu.dimension_semantics<parallel>], iteration_bounds = array<i64: 1>, scalar_prefetch = 0 : i64, scratch_operands = 0 : i64, tpu.core_type = #tpu.core_type<tc>, window_params = [{transform_indices = @transform_0, window_bounds = array<i64: 8, 64>}, {pipeline_mode = #tpu.pipeline_mode<synchronous>, transform_indices = @transform_1, window_bounds = array<i64: 64, 2>}, {pipeline_mode = #tpu.pipeline_mode<synchronous>, transform_indices = @transform_2, window_bounds = array<i64: 1, 2>}, {transform_indices = @transform_3, window_bounds = array<i64: 8, 2>}]} {
    %c0 = arith.constant 0 : index
    %c0_0 = arith.constant 0 : index
    %0 = vector.load %arg1[%c0, %c0_0] : memref<8x64xf32, #tpu.memory_space<vmem>>, vector<8x64xf32>
    %c0_1 = arith.constant 0 : index
    %c0_2 = arith.constant 0 : index
    %1 = vector.load %arg2[%c0_1, %c0_2] : memref<64x2xf32, #tpu.memory_space<vmem>>, vector<64x2xf32>
    %cst = arith.constant dense<0.000000e+00> : vector<8x2xf32>
    %2 = tpu.matmul %0, %1, %cst {dimension_numbers = #tpu.dot_dimension_numbers<[1], [0], [0], [1], [0, 0, 1, 1], [], []>} : vector<8x64xf32>, vector<64x2xf32>, vector<8x2xf32> -> vector<8x2xf32>
    %c0_3 = arith.constant 0 : index
    %c0_4 = arith.constant 0 : index
    %3 = vector.load %arg3[%c0_3, %c0_4] : memref<1x2xf32, #tpu.memory_space<vmem>>, vector<1x2xf32>
    %4 = vector.broadcast %3 : vector<1x2xf32> to vector<8x2xf32>
    %5 = arith.addf %2, %4 : vector<8x2xf32>
    %c0_5 = arith.constant 0 : index
    %c0_6 = arith.constant 0 : index
    %6 = vector.load %arg4[%c0_5, %c0_6] : memref<8x2xf32, #tpu.memory_space<vmem>>, vector<8x2xf32>
    tpu.vector_store %arg4[%c0_5, %c0_6], %5 {strides = array<i32>} : memref<8x2xf32, #tpu.memory_space<vmem>>, vector<8x2xf32>,
    return
  }
  func.func @transform_0(%arg0: i32) -> (i32, i32) {
    %c0_i32 = arith.constant 0 : i32
    %c0_i32_0 = arith.constant 0 : i32
    return %arg0, %c0_i32 : i32, i32
  }
  func.func @transform_1(%arg0: i32) -> (i32, i32) {
    %c0_i32 = arith.constant 0 : i32
    %c0_i32_0 = arith.constant 0 : i32
    %c0_i32_1 = arith.constant 0 : i32
    return %c0_i32, %c0_i32_0 : i32, i32
  }
  func.func @transform_2(%arg0: i32) -> (i32, i32) {
    %c0_i32 = arith.constant 0 : i32
    %c0_i32_0 = arith.constant 0 : i32
    %c0_i32_1 = arith.constant 0 : i32
    return %c0_i32, %c0_i32_0 : i32, i32
  }
  func.func @transform_3(%arg0: i32) -> (i32, i32) {
    %c0_i32 = arith.constant 0 : i32
    %c0_i32_0 = arith.constant 0 : i32
    return %arg0, %c0_i32 : i32, i32
  }
}

</mosaic_0001>

<llo_original>
// kernel: quantum_layer.1
$region0: #{quantum_layer.1}
  #allocation0 [shape = 'u32[]', space=smem, size = 0x4, offset = 0x4, fixed_abs, tag = 'smem constant byte address 0x4 - core index']
  #allocation1 [shape = 'u32[144,128]{1,0:T(1,128)}', space=vmem, size = 0x12000, scoped, tag = 'internal scratch']
  %s0 = inlined_call_operand.vmem [shape: f32[8,64], index: 0, kind: input, shape index: {}]
  %s1 = inlined_call_operand.vmem [shape: f32[64,2], index: 1, kind: input, shape index: {}]
  %s2 = inlined_call_operand.vmem [shape: f32[1,2], index: 2, kind: input, shape index: {}]
  %s3 = inlined_call_operand.vmem [shape: f32[8,2], index: 3, kind: output, shape index: {}]
  %s4 = sld [smem:[#allocation0]]
  $region22: #{quantum_layer.1} parent=0
    _
  %s6 = ssub.s32 1, %s4
  %s7 = scalar_select 0, %s6, %s4
  // Predicated region
  $region2: #{quantum_layer.1} parent=0 // pred_check
    _
  $region3: #{quantum_layer.1} parent=0 // pred_check_branch
    %9 = sbr.rel (0) target = $region5
  $region4: #{quantum_layer.1} parent=0 // pred_region
    _
  $region5: #{quantum_layer.1} parent=0 // pred_fallthru
    _
  // Predicated region
  $region6: #{quantum_layer.1} parent=0 // pred_check
    _
  $region7: #{quantum_layer.1} parent=0 // pred_check_branch
    %11 = sbr.rel (0) target = $region9
  $region8: #{quantum_layer.1} parent=0 // pred_region
    _
  $region9: #{quantum_layer.1} parent=0 // pred_fallthru
    _
  // Predicated region
  $region10: #{quantum_layer.1} parent=0 // pred_check
    _
  $region11: #{quantum_layer.1} parent=0 // pred_check_branch
    %13 = sbr.rel (0) target = $region13
  $region12: #{quantum_layer.1} parent=0 // pred_region
    _
  $region13: #{quantum_layer.1} parent=0 // pred_fallthru
    _
  %v14 = vld [vmem:[%s0] sm:$0xff]
  %v15 = vld [vmem:[%s1] sm:$0xff]
  %v16 = vld [vmem:[%s1 + $0x8] sm:$0xff]
  %v17 = vld [vmem:[%s1 + $0x10] sm:$0xff]
  %v18 = vld [vmem:[%s1 + $0x18] sm:$0xff]
  %v19 = vld [vmem:[%s1 + $0x20] sm:$0xff]
  %v20 = vld [vmem:[%s1 + $0x28] sm:$0xff]
  %v21 = vld [vmem:[%s1 + $0x30] sm:$0xff]
  %v22 = vld [vmem:[%s1 + $0x38] sm:$0xff]
  %v23 = vld [vmem:[%s2] sm:$0x1]
  %v25 = vlaneseq
  %v26 = vshrl.u32 %v25, 7
  %v27 = vsub.s32 0, %v26
  %v28 = vrot.slane %v23, %v27
  %vm30 = vcmask 523264
  %v32 = vsel %vm30, %v14, 0
  %34 = vmatprep.subr.mxu0 0.0
  %35 = vmatpush1.msra.mxu0 0.0
  %36 = vmatprep.subr.mxu0 0.0
  %37 = vmatpush1.msra.mxu0 0.0
  %38 = vmatprep.subr.mxu0 0.0
  %39 = vmatpush1.msra.mxu0 0.0
  %40 = vmatprep.subr.mxu0 0.0
  %41 = vmatpush1.msra.mxu0 0.0
  %42 = vmatprep.subr.mxu0 0.0
  %43 = vmatpush1.msra.mxu0 0.0
  %44 = vmatprep.subr.mxu0 0.0
  %45 = vmatpush1.msra.mxu0 0.0
  %46 = vmatprep.subr.mxu0 0.0
  %47 = vmatpush1.msra.mxu0 0.0
  %48 = vmatprep.subr.mxu0 0.0
  %49 = vmatpush1.msra.mxu0 0.0
  %50 = vmatprep.subr.mxu0 0.0
  %51 = vmatpush1.msra.mxu0 %v22
  %52 = vmatprep.subr.mxu0 0.0
  %53 = vmatpush1.msra.mxu0 %v21
  %54 = vmatprep.subr.mxu0 0.0
  %55 = vmatpush1.msra.mxu0 %v20
  %56 = vmatprep.subr.mxu0 0.0
  %57 = vmatpush1.msra.mxu0 %v19
  %58 = vmatprep.subr.mxu0 0.0
  %59 = vmatpush1.msra.mxu0 %v18
  %60 = vmatprep.subr.mxu0 0.0
  %61 = vmatpush1.msra.mxu0 %v17
  %62 = vmatprep.subr.mxu0 0.0
  %63 = vmatpush1.msra.mxu0 %v16
  %64 = vmatprep.subr.mxu0 0.0
  %65 = vmatpush1.msra.mxu0 %v15
  %66 = vmatprep.subr.mxu0 0.0
  %67 = vmatpush2.msra.mxu0 0.0
  %68 = vmatprep.subr.mxu0 0.0
  %69 = vmatpush2.msra.mxu0 0.0
  %70 = vmatprep.subr.mxu0 0.0
  %71 = vmatpush2.msra.mxu0 0.0
  %72 = vmatprep.subr.mxu0 0.0
  %73 = vmatpush2.msra.mxu0 0.0
  %74 = vmatprep.subr.mxu0 0.0
  %75 = vmatpush2.msra.mxu0 0.0
  %76 = vmatprep.subr.mxu0 0.0
  %77 = vmatpush2.msra.mxu0 0.0
  %78 = vmatprep.subr.mxu0 0.0
  %79 = vmatpush2.msra.mxu0 0.0
  %80 = vmatprep.subr.mxu0 0.0
  %81 = vmatpush2.msra.mxu0 0.0
  %82 = vmatprep.subr.mxu0 0.0
  %83 = vmatpush2.msra.mxu0 0.0
  %84 = vmatprep.subr.mxu0 0.0
  %85 = vmatpush2.msra.mxu0 0.0
  %86 = vmatprep.subr.mxu0 0.0
  %87 = vmatpush2.msra.mxu0 0.0
  %88 = vmatprep.subr.mxu0 0.0
  %89 = vmatpush2.msra.mxu0 0.0
  %90 = vmatprep.subr.mxu0 0.0
  %91 = vmatpush2.msra.mxu0 0.0
  %92 = vmatprep.subr.mxu0 0.0
  %93 = vmatpush2.msra.mxu0 0.0
  %94 = vmatprep.subr.mxu0 0.0
  %95 = vmatpush2.msra.mxu0 0.0
  %96 = vmatprep.subr.mxu0 0.0
  %97 = vmatpush2.msra.mxu0 0.0
  %98 = vmatprep.mubr.f32.mxu0 0.0
  %99 = vmatmul.mubr.f32.gmra.mxu0 %v32
  %v100 = vpop.f32.mrf.mxu0
  %v101 = vadd.f32 %v28, %v100
  %v102 = vpop.f32.mrf.mxu0
  %103 = vdwg.mxu0
  %vm104 = vcmask 15360
  %105 = vst.msk [vmem:[%s3] sm:$0xff] %vm104, %v101
  // Predicated region
  $region14: #{quantum_layer.1} parent=0 // pred_check
    _
  $region15: #{quantum_layer.1} parent=0 // pred_check_branch
    %107 = sbr.rel (0) target = $region17
  $region16: #{quantum_layer.1} parent=0 // pred_region
    _
  $region17: #{quantum_layer.1} parent=0 // pred_fallthru
    _
  // Predicated region
  $region18: #{quantum_layer.1} parent=0 // pred_check
    _
  $region19: #{quantum_layer.1} parent=0 // pred_check_branch
    %109 = sbr.rel (0) target = $region21
  $region20: #{quantum_layer.1} parent=0 // pred_region
    _
  $region21: #{quantum_layer.1} parent=0 // pred_fallthru
    _

</llo_original>
